<compile_context>
chip_gen: v7x
topology: tpu7x:2x2x1
jax: 0.10.0
libtpu: 0.0.40
codegen_flags: <defaults>
</compile_context>

<pallas_src>
import functools

import jax
import jax.numpy as jnp
from jax import lax
from jax.experimental import pallas as pl
from jax.experimental.pallas import tpu as pltpu


# ----------------------------------------------------------------------------
# Fused kernel: Linear(3,4)+ReLU and Conv2d(3,3,3)+ReLU (as im2col matmul)
# ----------------------------------------------------------------------------
def _fused_kernel(x_lin_ref, w_lin_ref, b_lin_ref,
                  p_ref, w_conv_ref, b_conv_ref,
                  o_lin_ref, o_conv_ref, *, n_batch):
    # ---- Linear(3, 4) + ReLU: one MXU pass, contracting K against the
    #      (Nout, K) weight exactly as nn.Linear stores it. ----
    y = lax.dot_general(
        x_lin_ref[...], w_lin_ref[...],
        dimension_numbers=(((1,), (1,)), ((), ())),
        preferred_element_type=jnp.float32)                  # (B, Nout)
    o_lin_ref[...] = jnp.maximum(y + b_lin_ref[...], 0.0)

    # ---- Conv2d(3, 3, 3) + ReLU: per-sample (Cout,K) @ (K,Lp) MXU dots.
    #      Lp is a multiple of 128, so stores are unmasked and lane-dense. ----
    w2 = w_conv_ref[...]                                     # (Cout, Kdim)
    b2 = b_conv_ref[...]                                     # (Cout, 1)
    for n in range(n_batch):                                 # N=2: two tiny dots
        acc = jnp.dot(w2, p_ref[n],
                      preferred_element_type=jnp.float32)    # (Cout, Lp)
        o_conv_ref[n] = jnp.maximum(acc + b2, 0.0)


# ----------------------------------------------------------------------------
# Wrapper: layout plumbing only (no transposes); contraction/bias/ReLU in-kernel
# ----------------------------------------------------------------------------
def my_module_forward(x_lin, w_lin, b_lin, x_conv, w_conv, b_conv):
    """Applies [Linear(3,4), ReLU] to x_lin and [Conv2d(3,3,3), ReLU] to x_conv."""
    B, K = x_lin.shape
    Nout = w_lin.shape[0]

    N, Cin, H, W = x_conv.shape
    Cout, _, KH, KW = w_conv.shape
    Ho, Wo = H - KH + 1, W - KW + 1
    Kdim = Cin * KH * KW
    L = Ho * Wo
    Lp = pl.cdiv(L, 128) * 128        # pad 196 -> 256: unmasked lane-dense stores

    # Transpose-free im2col, batch leading. K axis ordered (ci, i, j) to match
    # w_conv.reshape(Cout, Cin*KH*KW).
    cols = [x_conv[:, :, i:i + Ho, j:j + Wo]
            for i in range(KH) for j in range(KW)]           # 9 x (N, Cin, Ho, Wo)
    patches = jnp.stack(cols, axis=2).reshape(N, Kdim, L)    # (N, 27, 196)
    patches = jnp.pad(patches, ((0, 0), (0, 0), (0, Lp - L)))  # (N, 27, Lp)

    w_conv2 = w_conv.reshape(Cout, Kdim)                     # (Cout, 27)
    b_lin2 = b_lin.reshape(1, Nout)                          # (1, Nout)
    b_conv2 = b_conv.reshape(Cout, 1)                        # (Cout, 1)

    kernel = functools.partial(_fused_kernel, n_batch=N)
    y_lin, y_conv = pl.pallas_call(
        kernel,
        out_shape=(jax.ShapeDtypeStruct((B, Nout), jnp.float32),
                   jax.ShapeDtypeStruct((N, Cout, Lp), jnp.float32)),
        in_specs=[pl.BlockSpec(memory_space=pltpu.MemorySpace.VMEM)
                  for _ in range(6)],
        out_specs=(pl.BlockSpec(memory_space=pltpu.MemorySpace.VMEM),
                   pl.BlockSpec(memory_space=pltpu.MemorySpace.VMEM)),
        cost_estimate=pl.CostEstimate(
            flops=2 * B * K * Nout + 2 * N * Cout * Kdim * Lp,
            transcendentals=0,
            bytes_accessed=4 * (B * K + Nout * K + Nout + B * Nout
                                + N * Kdim * Lp + Cout * Kdim + Cout
                                + N * Cout * Lp)),
    )(x_lin, w_lin, b_lin2, patches, w_conv2, b_conv2)

    # Slice off the lane pad; metadata-only reshape back to NCHW. No transposes.
    y_conv = y_conv[:, :, :L].reshape(N, Cout, Ho, Wo)
    return y_lin, y_conv


# ----------------------------------------------------------------------------
# Main
# ----------------------------------------------------------------------------
if __name__ == "__main__":
    key = jax.random.PRNGKey(0)
    k_xl, k_wl, k_bl, k_xc, k_wc, k_bc = jax.random.split(key, 6)

    # ---- Linear(3, 4) + ReLU inputs ----
    B = 8
    x_lin = jax.random.normal(k_xl, (B, 3), dtype=jnp.float32)
    w_lin = jax.random.normal(k_wl, (4, 3), dtype=jnp.float32) * 0.5   # nn.Linear weight
    b_lin = jax.random.normal(k_bl, (4,), dtype=jnp.float32) * 0.1

    # ---- Conv2d(3, 3, 3) + ReLU inputs (NCHW, OIHW, VALID) ----
    N, Cin, H, W = 2, 3, 16, 16
    x_conv = jax.random.normal(k_xc, (N, Cin, H, W), dtype=jnp.float32)
    w_conv = jax.random.normal(k_wc, (3, 3, 3, 3), dtype=jnp.float32) * 0.2
    b_conv = jax.random.normal(k_bc, (3,), dtype=jnp.float32) * 0.1

    y_lin, y_conv = jax.block_until_ready(
        my_module_forward(x_lin, w_lin, b_lin, x_conv, w_conv, b_conv))

    # ---- references ----
    ref_lin = jnp.maximum(x_lin @ w_lin.T + b_lin, 0.0)
    assert y_lin.shape == (B, 4)
    assert jnp.allclose(y_lin, ref_lin, atol=1e-5), "linear mismatch"

    ref_conv = lax.conv_general_dilated(
        x_conv, w_conv, window_strides=(1, 1), padding="VALID",
        dimension_numbers=("NCHW", "OIHW", "NCHW"))
    ref_conv = jnp.maximum(ref_conv + b_conv.reshape(1, 3, 1, 1), 0.0)
    assert y_conv.shape == (N, 3, H - 2, W - 2)
    assert jnp.allclose(y_conv, ref_conv, atol=1e-4), "conv mismatch"

    print("KERNEL_OK")
</pallas_src>

<mosaic_0001>
module attributes {stable_mosaic.version = 11 : i64} {
  func.func @_fused_kernel(%arg0: memref<8x3xf32, #tpu.memory_space<vmem>>, %arg1: memref<4x3xf32, #tpu.memory_space<vmem>>, %arg2: memref<1x4xf32, #tpu.memory_space<vmem>>, %arg3: memref<2x27x256xf32, #tpu.memory_space<vmem>>, %arg4: memref<3x27xf32, #tpu.memory_space<vmem>>, %arg5: memref<3x1xf32, #tpu.memory_space<vmem>>, %arg6: memref<8x4xf32, #tpu.memory_space<vmem>>, %arg7: memref<2x3x256xf32, #tpu.memory_space<vmem>>) attributes {dimension_semantics = [], scalar_prefetch = 0 : i64, scratch_operands = 0 : i64, tpu.core_type = #tpu.core_type<tc>} {
    %c0 = arith.constant 0 : index
    %c0_0 = arith.constant 0 : index
    %0 = vector.load %arg0[%c0, %c0_0] : memref<8x3xf32, #tpu.memory_space<vmem>>, vector<8x3xf32>
    %c0_1 = arith.constant 0 : index
    %c0_2 = arith.constant 0 : index
    %1 = vector.load %arg1[%c0_1, %c0_2] : memref<4x3xf32, #tpu.memory_space<vmem>>, vector<4x3xf32>
    %cst = arith.constant dense<0.000000e+00> : vector<8x4xf32>
    %2 = tpu.matmul %0, %1, %cst {dimension_numbers = #tpu.dot_dimension_numbers<[1], [1], [0], [0], [0, 0, 1, 0], [], []>} : vector<8x3xf32>, vector<4x3xf32>, vector<8x4xf32> -> vector<8x4xf32>
    %c0_3 = arith.constant 0 : index
    %c0_4 = arith.constant 0 : index
    %3 = vector.load %arg2[%c0_3, %c0_4] : memref<1x4xf32, #tpu.memory_space<vmem>>, vector<1x4xf32>
    %4 = vector.broadcast %3 : vector<1x4xf32> to vector<8x4xf32>
    %5 = arith.addf %2, %4 : vector<8x4xf32>
    %cst_5 = arith.constant 0.000000e+00 : f32
    %6 = vector.broadcast %cst_5 : f32 to vector<8x4xf32>
    %7 = arith.maximumf %5, %6 : vector<8x4xf32>
    %c0_6 = arith.constant 0 : index
    %c0_7 = arith.constant 0 : index
    %8 = vector.load %arg6[%c0_6, %c0_7] : memref<8x4xf32, #tpu.memory_space<vmem>>, vector<8x4xf32>
    tpu.vector_store %arg6[%c0_6, %c0_7], %7 {strides = array<i32>} : memref<8x4xf32, #tpu.memory_space<vmem>>, vector<8x4xf32>,
    %c0_8 = arith.constant 0 : index
    %c0_9 = arith.constant 0 : index
    %9 = vector.load %arg4[%c0_8, %c0_9] : memref<3x27xf32, #tpu.memory_space<vmem>>, vector<3x27xf32>
    %c0_10 = arith.constant 0 : index
    %c0_11 = arith.constant 0 : index
    %10 = vector.load %arg5[%c0_10, %c0_11] : memref<3x1xf32, #tpu.memory_space<vmem>>, vector<3x1xf32>
    %c0_12 = arith.constant 0 : index
    %c0_13 = arith.constant 0 : index
    %c0_14 = arith.constant 0 : index
    %11 = vector.load %arg3[%c0_12, %c0_13, %c0_14] : memref<2x27x256xf32, #tpu.memory_space<vmem>>, vector<1x27x256xf32>
    %12 = vector.shape_cast %11 : vector<1x27x256xf32> to vector<27x256xf32>
    %cst_15 = arith.constant dense<0.000000e+00> : vector<3x256xf32>
    %13 = tpu.matmul %9, %12, %cst_15 {dimension_numbers = #tpu.dot_dimension_numbers<[1], [0], [0], [1], [0, 0, 1, 1], [], []>} : vector<3x27xf32>, vector<27x256xf32>, vector<3x256xf32> -> vector<3x256xf32>
    %14 = vector.broadcast %10 : vector<3x1xf32> to vector<3x256xf32>
    %15 = arith.addf %13, %14 : vector<3x256xf32>
    %cst_16 = arith.constant 0.000000e+00 : f32
    %16 = vector.broadcast %cst_16 : f32 to vector<3x256xf32>
    %17 = arith.maximumf %15, %16 : vector<3x256xf32>
    %c0_17 = arith.constant 0 : index
    %c0_18 = arith.constant 0 : index
    %c0_19 = arith.constant 0 : index
    %18 = vector.load %arg7[%c0_17, %c0_18, %c0_19] : memref<2x3x256xf32, #tpu.memory_space<vmem>>, vector<1x3x256xf32>
    %19 = vector.shape_cast %18 : vector<1x3x256xf32> to vector<3x256xf32>
    %20 = vector.shape_cast %17 : vector<3x256xf32> to vector<1x3x256xf32>
    tpu.vector_store %arg7[%c0_17, %c0_18, %c0_19], %20 {strides = array<i32>} : memref<2x3x256xf32, #tpu.memory_space<vmem>>, vector<1x3x256xf32>,
    %c1 = arith.constant 1 : index
    %c0_20 = arith.constant 0 : index
    %c0_21 = arith.constant 0 : index
    %21 = vector.load %arg3[%c1, %c0_20, %c0_21] : memref<2x27x256xf32, #tpu.memory_space<vmem>>, vector<1x27x256xf32>
    %22 = vector.shape_cast %21 : vector<1x27x256xf32> to vector<27x256xf32>
    %cst_22 = arith.constant dense<0.000000e+00> : vector<3x256xf32>
    %23 = tpu.matmul %9, %22, %cst_22 {dimension_numbers = #tpu.dot_dimension_numbers<[1], [0], [0], [1], [0, 0, 1, 1], [], []>} : vector<3x27xf32>, vector<27x256xf32>, vector<3x256xf32> -> vector<3x256xf32>
    %24 = vector.broadcast %10 : vector<3x1xf32> to vector<3x256xf32>
    %25 = arith.addf %23, %24 : vector<3x256xf32>
    %cst_23 = arith.constant 0.000000e+00 : f32
    %26 = vector.broadcast %cst_23 : f32 to vector<3x256xf32>
    %27 = arith.maximumf %25, %26 : vector<3x256xf32>
    %c1_24 = arith.constant 1 : index
    %c0_25 = arith.constant 0 : index
    %c0_26 = arith.constant 0 : index
    %28 = vector.load %arg7[%c1_24, %c0_25, %c0_26] : memref<2x3x256xf32, #tpu.memory_space<vmem>>, vector<1x3x256xf32>
    %29 = vector.shape_cast %28 : vector<1x3x256xf32> to vector<3x256xf32>
    %30 = vector.shape_cast %27 : vector<3x256xf32> to vector<1x3x256xf32>
    tpu.vector_store %arg7[%c1_24, %c0_25, %c0_26], %30 {strides = array<i32>} : memref<2x3x256xf32, #tpu.memory_space<vmem>>, vector<1x3x256xf32>,
    return
  }
}

</mosaic_0001>

<llo_original>
// kernel: tpu_custom_call.1
$region0: #{tpu_custom_call.1}
  #allocation0 [shape = 'u32[]', space=smem, size = 0x4, offset = 0x4, fixed_abs, tag = 'smem constant byte address 0x4 - core index']
  #allocation1 [shape = 'u32[144,128]{1,0:T(1,128)}', space=vmem, size = 0x12000, scoped, tag = 'internal scratch']
  %s0 = inlined_call_operand.vmem [shape: f32[8,3], index: 0, kind: input, shape index: {}]
  %s1 = inlined_call_operand.vmem [shape: f32[4,3], index: 1, kind: input, shape index: {}]
  %s2 = inlined_call_operand.vmem [shape: f32[1,4], index: 2, kind: input, shape index: {}]
  %s3 = inlined_call_operand.vmem [shape: f32[2,27,256], index: 3, kind: input, shape index: {}]
  %s4 = inlined_call_operand.vmem [shape: f32[3,27], index: 4, kind: input, shape index: {}]
  %s5 = inlined_call_operand.vmem [shape: f32[3,1], index: 5, kind: input, shape index: {}]
  %s6 = inlined_call_operand.vmem [shape: f32[8,4], index: 6, kind: output, shape index: {0}]
  %s7 = inlined_call_operand.vmem [shape: f32[2,3,256], index: 7, kind: output, shape index: {1}]
  %8 = xla_tuple %s6, %s7
  %s9 = sld [smem:[#allocation0]]
  $region42: #{tpu_custom_call.1} parent=0
    _
  %s11 = ssub.s32 1, %s9
  %s12 = scalar_select 0, %s11, %s9
  // Predicated region
  $region2: #{tpu_custom_call.1} parent=0 // pred_check
    _
  $region3: #{tpu_custom_call.1} parent=0 // pred_check_branch
    %14 = sbr.rel (0) target = $region5
  $region4: #{tpu_custom_call.1} parent=0 // pred_region
    _
  $region5: #{tpu_custom_call.1} parent=0 // pred_fallthru
    _
  // Predicated region
  $region6: #{tpu_custom_call.1} parent=0 // pred_check
    _
  $region7: #{tpu_custom_call.1} parent=0 // pred_check_branch
    %16 = sbr.rel (0) target = $region9
  $region8: #{tpu_custom_call.1} parent=0 // pred_region
    _
  $region9: #{tpu_custom_call.1} parent=0 // pred_fallthru
    _
  // Predicated region
  $region10: #{tpu_custom_call.1} parent=0 // pred_check
    _
  $region11: #{tpu_custom_call.1} parent=0 // pred_check_branch
    %18 = sbr.rel (0) target = $region13
  $region12: #{tpu_custom_call.1} parent=0 // pred_region
    _
  $region13: #{tpu_custom_call.1} parent=0 // pred_fallthru
    _
  // Predicated region
  $region14: #{tpu_custom_call.1} parent=0 // pred_check
    _
  $region15: #{tpu_custom_call.1} parent=0 // pred_check_branch
    %20 = sbr.rel (0) target = $region17
  $region16: #{tpu_custom_call.1} parent=0 // pred_region
    _
  $region17: #{tpu_custom_call.1} parent=0 // pred_fallthru
    _
  // Predicated region
  $region18: #{tpu_custom_call.1} parent=0 // pred_check
    _
  $region19: #{tpu_custom_call.1} parent=0 // pred_check_branch
    %22 = sbr.rel (0) target = $region21
  $region20: #{tpu_custom_call.1} parent=0 // pred_region
    _
  $region21: #{tpu_custom_call.1} parent=0 // pred_fallthru
    _
  // Predicated region
  $region22: #{tpu_custom_call.1} parent=0 // pred_check
    _
  $region23: #{tpu_custom_call.1} parent=0 // pred_check_branch
    %24 = sbr.rel (0) target = $region25
  $region24: #{tpu_custom_call.1} parent=0 // pred_region
    _
  $region25: #{tpu_custom_call.1} parent=0 // pred_fallthru
    _
  %v25 = vld [vmem:[%s0] sm:$0xff]
  %v26 = vld [vmem:[%s1] sm:$0xf]
  %v27 = vld [vmem:[%s2] sm:$0x1]
  %v29 = vlaneseq
  %v30 = vshrl.u32 %v29, 7
  %v31 = vsub.s32 0, %v30
  %v32 = vrot.slane %v27, %v31
  %vm34 = vcmask 23552
  %v36 = vsel %vm34, %v25, 0
  %v39 = vsel %vm34, %v26, 0
  %41 = vmatprep.subr.mxu0 0.0
  %42 = vmatpush1.xpose.msra.mxu0 %v39
  %43 = vmatprep.subr.mxu0 0.0
  %44 = vmatpush1.xpose.msra.mxu0 0.0
  %45 = vmatprep.subr.mxu0 0.0
  %46 = vmatpush1.xpose.msra.mxu0 0.0
  %47 = vmatprep.subr.mxu0 0.0
  %48 = vmatpush1.xpose.msra.mxu0 0.0
  %49 = vmatprep.subr.mxu0 0.0
  %50 = vmatpush1.xpose.msra.mxu0 0.0
  %51 = vmatprep.subr.mxu0 0.0
  %52 = vmatpush1.xpose.msra.mxu0 0.0
  %53 = vmatprep.subr.mxu0 0.0
  %54 = vmatpush1.xpose.msra.mxu0 0.0
  %55 = vmatprep.subr.mxu0 0.0
  %56 = vmatpush1.xpose.msra.mxu0 0.0
  %57 = vmatprep.subr.mxu0 0.0
  %58 = vmatpush1.xpose.msra.mxu0 0.0
  %59 = vmatprep.subr.mxu0 0.0
  %60 = vmatpush1.xpose.msra.mxu0 0.0
  %61 = vmatprep.subr.mxu0 0.0
  %62 = vmatpush1.xpose.msra.mxu0 0.0
  %63 = vmatprep.subr.mxu0 0.0
  %64 = vmatpush1.xpose.msra.mxu0 0.0
  %65 = vmatprep.subr.mxu0 0.0
  %66 = vmatpush1.xpose.msra.mxu0 0.0
  %67 = vmatprep.subr.mxu0 0.0
  %68 = vmatpush1.xpose.msra.mxu0 0.0
  %69 = vmatprep.subr.mxu0 0.0
  %70 = vmatpush1.xpose.msra.mxu0 0.0
  %71 = vmatprep.subr.mxu0 0.0
  %72 = vmatpush1.xpose.msra.mxu0 0.0
  %73 = vmatprep.subr.mxu0 0.0
  %74 = vmatpush1.xpose.msra.mxu0 0.0
  %75 = vmatprep.subr.mxu0 0.0
  %76 = vmatpush1.xpose.msra.mxu0 0.0
  %77 = vmatprep.subr.mxu0 0.0
  %78 = vmatpush1.xpose.msra.mxu0 0.0
  %79 = vmatprep.subr.mxu0 0.0
  %80 = vmatpush1.xpose.msra.mxu0 0.0
  %81 = vmatprep.subr.mxu0 0.0
  %82 = vmatpush1.xpose.msra.mxu0 0.0
  %83 = vmatprep.subr.mxu0 0.0
  %84 = vmatpush1.xpose.msra.mxu0 0.0
  %85 = vmatprep.subr.mxu0 0.0
  %86 = vmatpush1.xpose.msra.mxu0 0.0
  %87 = vmatprep.subr.mxu0 0.0
  %88 = vmatpush1.xpose.msra.mxu0 0.0
  %89 = vmatprep.subr.mxu0 0.0
  %90 = vmatpush1.xpose.msra.mxu0 0.0
  %91 = vmatprep.subr.mxu0 0.0
  %92 = vmatpush1.xpose.msra.mxu0 0.0
  %93 = vmatprep.subr.mxu0 0.0
  %94 = vmatpush1.xpose.msra.mxu0 0.0
  %95 = vmatprep.subr.mxu0 0.0
  %96 = vmatpush1.xpose.msra.mxu0 0.0
  %97 = vmatprep.subr.mxu0 0.0
  %98 = vmatpush1.xpose.msra.mxu0 0.0
  %99 = vmatprep.subr.mxu0 0.0
  %100 = vmatpush1.xpose.msra.mxu0 0.0
  %101 = vmatprep.subr.mxu0 0.0
  %102 = vmatpush1.xpose.msra.mxu0 0.0
  %103 = vmatprep.subr.mxu0 0.0
  %104 = vmatpush1.xpose.msra.mxu0 0.0
  %105 = vmatprep.mubr.f32.mxu0 0.0
  %106 = vmatmul.mubr.f32.gmra.mrb[0].mxu0 %v36
  %v107 = vpop.f32.mrb[0].mxu0
  %v108 = vadd.f32 %v32, %v107
  %v109 = vpop.f32.mrb[0].mxu0
  %110 = vdwg.mxu0
  %v111 = vmax.f32 %v108, 0.0
  %vm112 = vcmask 31744
  %113 = vst.msk [vmem:[%s6] sm:$0xff] %vm112, %v111
  %v114 = vld [vmem:[%s4] sm:$0x7]
  %v115 = vld [vmem:[%s5] sm:$0x7]
  %v116 = vld [vmem:[%s3] sm:$0xff]
  %v117 = vld [vmem:[%s3 + $0x8] sm:$0xff]
  %v118 = vld [vmem:[%s3 + $0x10] sm:$0xff]
  %v119 = vld [vmem:[%s3 + $0x18] sm:$0xff]
  %v120 = vld [vmem:[%s3 + $0x20] sm:$0xff]
  %v121 = vld [vmem:[%s3 + $0x28] sm:$0xff]
  %v122 = vld [vmem:[%s3 + $0x30] sm:$0x7]
  %v123 = vld [vmem:[%s3 + $0x38] sm:$0x7]
  %125 = vset.pattern.permute.xlu0 0
  %126 = vperm.xlu0 %125, %v115
  %v127 = vpop.permute.xlu0 %126
  %vm129 = vcmask 220160
  %v131 = vsel %vm129, %v114, 0
  %vm133 = vcmask 1042432
  %v135 = vsel %vm133, %v122, 0
  %v138 = vsel %vm133, %v123, 0
  %140 = vmatprep.subr.mxu0 %v117
  %141 = vmatpush1.msra.mxu0 %v116
  %142 = vmatprep.subr.mxu0 %v119
  %143 = vmatpush1.msra.mxu0 %v118
  %144 = vmatprep.subr.mxu0 %v121
  %145 = vmatpush1.msra.mxu0 %v120
  %146 = vmatprep.subr.mxu0 %v138
  %147 = vmatpush1.msra.mxu0 %v135
  %148 = vmatprep.subr.mxu0 0.0
  %149 = vmatpush1.msra.mxu0 0.0
  %150 = vmatprep.subr.mxu0 0.0
  %151 = vmatpush1.msra.mxu0 0.0
  %152 = vmatprep.subr.mxu0 0.0
  %153 = vmatpush1.msra.mxu0 0.0
  %154 = vmatprep.subr.mxu0 0.0
  %155 = vmatpush1.msra.mxu0 0.0
  %156 = vmatprep.subr.mxu0 0.0
  %157 = vmatpush1.msra.mxu0 0.0
  %158 = vmatprep.subr.mxu0 0.0
  %159 = vmatpush1.msra.mxu0 0.0
  %160 = vmatprep.subr.mxu0 0.0
  %161 = vmatpush1.msra.mxu0 0.0
  %162 = vmatprep.subr.mxu0 0.0
  %163 = vmatpush1.msra.mxu0 0.0
  %164 = vmatprep.subr.mxu0 0.0
  %165 = vmatpush1.msra.mxu0 0.0
  %166 = vmatprep.subr.mxu0 0.0
  %167 = vmatpush1.msra.mxu0 0.0
  %168 = vmatprep.subr.mxu0 0.0
  %169 = vmatpush1.msra.mxu0 0.0
  %170 = vmatprep.subr.mxu0 0.0
  %171 = vmatpush1.msra.mxu0 0.0
  %172 = vmatprep.subr.mxu0 0.0
  %173 = vmatpush1.msra.mxu0 0.0
  %174 = vmatprep.subr.mxu0 0.0
  %175 = vmatpush1.msra.mxu0 0.0
  %176 = vmatprep.subr.mxu0 0.0
  %177 = vmatpush1.msra.mxu0 0.0
  %178 = vmatprep.subr.mxu0 0.0
  %179 = vmatpush1.msra.mxu0 0.0
  %180 = vmatprep.subr.mxu0 0.0
  %181 = vmatpush1.msra.mxu0 0.0
  %182 = vmatprep.subr.mxu0 0.0
  %183 = vmatpush1.msra.mxu0 0.0
  %184 = vmatprep.subr.mxu0 0.0
  %185 = vmatpush1.msra.mxu0 0.0
  %186 = vmatprep.subr.mxu0 0.0
  %187 = vmatpush1.msra.mxu0 0.0
  %188 = vmatprep.subr.mxu0 0.0
  %189 = vmatpush1.msra.mxu0 0.0
  %190 = vmatprep.subr.mxu0 0.0
  %191 = vmatpush1.msra.mxu0 0.0
  %192 = vmatprep.subr.mxu0 0.0
  %193 = vmatpush1.msra.mxu0 0.0
  %194 = vmatprep.subr.mxu0 0.0
  %195 = vmatpush1.msra.mxu0 0.0
  %196 = vmatprep.subr.mxu0 0.0
  %197 = vmatpush1.msra.mxu0 0.0
  %198 = vmatprep.subr.mxu0 0.0
  %199 = vmatpush1.msra.mxu0 0.0
  %200 = vmatprep.subr.mxu0 0.0
  %201 = vmatpush1.msra.mxu0 0.0
  %202 = vmatprep.subr.mxu0 0.0
  %203 = vmatpush1.msra.mxu0 0.0
  %204 = vmatprep.mubr.f32.mxu0 0.0
  %205 = vmatmul.mubr.f32.gmra.mrb[0].mxu0 %v131
  %v206 = vpop.f32.mrb[0].mxu0
  %v207 = vadd.f32 %v127, %v206
  %v208 = vpop.f32.mrb[0].mxu0
  %v209 = vadd.f32 %v127, %v208
  %210 = vdwg.mxu0
  %v211 = vmax.f32 %v207, 0.0
  %v212 = vmax.f32 %v209, 0.0
  %v215 = vcombine.low %v211, %v212
  %217 = vst [vmem:[%s7] sm:$0x77] %v215
  %s218 = scalar_lea.vmem %s3, 64
  %v219 = vld [vmem:[%s218] sm:$0xff]
  %v220 = vld [vmem:[%s218 + $0x8] sm:$0xff]
  %v221 = vld [vmem:[%s218 + $0x10] sm:$0xff]
  %v222 = vld [vmem:[%s218 + $0x18] sm:$0xff]
  %v223 = vld [vmem:[%s218 + $0x20] sm:$0xff]
  %v224 = vld [vmem:[%s218 + $0x28] sm:$0xff]
  %v225 = vld [vmem:[%s218 + $0x30] sm:$0x7]
  %v226 = vld [vmem:[%s218 + $0x38] sm:$0x7]
  %v228 = vsel %vm133, %v225, 0
  %v231 = vsel %vm133, %v226, 0
  %233 = vmatprep.subr.mxu0 %v220
  %234 = vmatpush1.msra.mxu0 %v219
  %235 = vmatprep.subr.mxu0 %v222
  %236 = vmatpush1.msra.mxu0 %v221
  %237 = vmatprep.subr.mxu0 %v224
  %238 = vmatpush1.msra.mxu0 %v223
  %239 = vmatprep.subr.mxu0 %v231
  %240 = vmatpush1.msra.mxu0 %v228
  %241 = vmatprep.subr.mxu0 0.0
  %242 = vmatpush1.msra.mxu0 0.0
  %243 = vmatprep.subr.mxu0 0.0
  %244 = vmatpush1.msra.mxu0 0.0
  %245 = vmatprep.subr.mxu0 0.0
  %246 = vmatpush1.msra.mxu0 0.0
  %247 = vmatprep.subr.mxu0 0.0
  %248 = vmatpush1.msra.mxu0 0.0
  %249 = vmatprep.subr.mxu0 0.0
  %250 = vmatpush1.msra.mxu0 0.0
  %251 = vmatprep.subr.mxu0 0.0
  %252 = vmatpush1.msra.mxu0 0.0
  %253 = vmatprep.subr.mxu0 0.0
  %254 = vmatpush1.msra.mxu0 0.0
  %255 = vmatprep.subr.mxu0 0.0
  %256 = vmatpush1.msra.mxu0 0.0
  %257 = vmatprep.subr.mxu0 0.0
  %258 = vmatpush1.msra.mxu0 0.0
  %259 = vmatprep.subr.mxu0 0.0
  %260 = vmatpush1.msra.mxu0 0.0
  %261 = vmatprep.subr.mxu0 0.0
  %262 = vmatpush1.msra.mxu0 0.0
  %263 = vmatprep.subr.mxu0 0.0
  %264 = vmatpush1.msra.mxu0 0.0
  %265 = vmatprep.subr.mxu0 0.0
  %266 = vmatpush1.msra.mxu0 0.0
  %267 = vmatprep.subr.mxu0 0.0
  %268 = vmatpush1.msra.mxu0 0.0
  %269 = vmatprep.subr.mxu0 0.0
  %270 = vmatpush1.msra.mxu0 0.0
  %271 = vmatprep.subr.mxu0 0.0
  %272 = vmatpush1.msra.mxu0 0.0
  %273 = vmatprep.subr.mxu0 0.0
  %274 = vmatpush1.msra.mxu0 0.0
  %275 = vmatprep.subr.mxu0 0.0
  %276 = vmatpush1.msra.mxu0 0.0
  %277 = vmatprep.subr.mxu0 0.0
  %278 = vmatpush1.msra.mxu0 0.0
  %279 = vmatprep.subr.mxu0 0.0
  %280 = vmatpush1.msra.mxu0 0.0
  %281 = vmatprep.subr.mxu0 0.0
  %282 = vmatpush1.msra.mxu0 0.0
  %283 = vmatprep.subr.mxu0 0.0
  %284 = vmatpush1.msra.mxu0 0.0
  %285 = vmatprep.subr.mxu0 0.0
  %286 = vmatpush1.msra.mxu0 0.0
  %287 = vmatprep.subr.mxu0 0.0
  %288 = vmatpush1.msra.mxu0 0.0
  %289 = vmatprep.subr.mxu0 0.0
  %290 = vmatpush1.msra.mxu0 0.0
  %291 = vmatprep.subr.mxu0 0.0
  %292 = vmatpush1.msra.mxu0 0.0
  %293 = vmatprep.subr.mxu0 0.0
  %294 = vmatpush1.msra.mxu0 0.0
  %295 = vmatprep.subr.mxu0 0.0
  %296 = vmatpush1.msra.mxu0 0.0
  %297 = vmatprep.mubr.f32.mxu0 0.0
  %298 = vmatmul.mubr.f32.gmra.mrb[0].mxu0 %v131
  %v299 = vpop.f32.mrb[0].mxu0
  %v300 = vadd.f32 %v127, %v299
  %v301 = vpop.f32.mrb[0].mxu0
  %v302 = vadd.f32 %v127, %v301
  %303 = vdwg.mxu0
  %v304 = vmax.f32 %v300, 0.0
  %v305 = vmax.f32 %v302, 0.0
  %v308 = vcombine.low %v304, %v305
  %s310 = scalar_lea.vmem %s7, 8
  %311 = vst [vmem:[%s310] sm:$0x77] %v308
  // Predicated region
  $region26: #{tpu_custom_call.1} parent=0 // pred_check
    _
  $region27: #{tpu_custom_call.1} parent=0 // pred_check_branch
    %313 = sbr.rel (0) target = $region29
  $region28: #{tpu_custom_call.1} parent=0 // pred_region
    _
  $region29: #{tpu_custom_call.1} parent=0 // pred_fallthru
    _
  // Predicated region
  $region30: #{tpu_custom_call.1} parent=0 // pred_check
    _
  $region31: #{tpu_custom_call.1} parent=0 // pred_check_branch
    %315 = sbr.rel (0) target = $region33
  $region32: #{tpu_custom_call.1} parent=0 // pred_region
    _
  $region33: #{tpu_custom_call.1} parent=0 // pred_fallthru
    _
  // Predicated region
  $region34: #{tpu_custom_call.1} parent=0 // pred_check
    _
  $region35: #{tpu_custom_call.1} parent=0 // pred_check_branch
    %317 = sbr.rel (0) target = $region37
  $region36: #{tpu_custom_call.1} parent=0 // pred_region
    _
  $region37: #{tpu_custom_call.1} parent=0 // pred_fallthru
    _
  // Predicated region
  $region38: #{tpu_custom_call.1} parent=0 // pred_check
    _
  $region39: #{tpu_custom_call.1} parent=0 // pred_check_branch
    %319 = sbr.rel (0) target = $region41
  $region40: #{tpu_custom_call.1} parent=0 // pred_region
    _
  $region41: #{tpu_custom_call.1} parent=0 // pred_fallthru
    _

</llo_original>
